<compile_context>
chip_gen: v6e
topology: v6e:2x2x1
jax: 0.10.0
libtpu: 0.0.40
codegen_flags: <defaults>
</compile_context>

<pallas_src>
import functools

import jax
import jax.numpy as jnp
from jax.experimental import pallas as pl
from jax.experimental.pallas import tpu as pltpu


def _fused_kernel(x_ref, w1_ref, b1_ref, w2_ref, b2_ref, o_ref, *, min_v, max_v):
    # x_ref : (Cin, TM)   channels-first pixel tile (pixels on the lane axis)
    # w1_ref: (Cmid, Cin) transposed-conv 1x1 weight     b1_ref: (Cmid, 1)
    # w2_ref: (Cout, Cmid) conv 1x1 weight               b2_ref: (Cout, 1)
    # o_ref : (Cout, TM)
    z = jnp.dot(w1_ref[...], x_ref[...], preferred_element_type=jnp.float32)
    z = z + b1_ref[...]                         # ConvTranspose2d (1x1) + bias
    v = jnp.maximum(z, min_v)                   # torch.clamp_min
    v = jnp.minimum(v, max_v)                   # torch.clamp_max
    o_ref[...] = (
        jnp.dot(w2_ref[...], v, preferred_element_type=jnp.float32)
        + b2_ref[...]
    ).astype(o_ref.dtype)                       # Conv2d (1x1) + bias


def model_forward(x, w1, b1, w2, b2,
                  min_value=0.592785640239, max_value=0.0528118573668,
                  stride=3, tm_max=512):
    """x: (N, Cin, H, W) f32 NCHW.
    w1: (Cmid, Cin)  = PyTorch conv_transpose.weight[:, :, 0, 0].T
    b1: (Cmid,)
    w2: (Cout, Cmid) = PyTorch conv.weight[:, :, 0, 0]
    b2: (Cout,)
    Returns (N, Cout, Ho, Wo) f32 with Ho = (H-1)*stride + 1 (same for W)."""
    N, Cin, H, W = x.shape
    Cmid = w1.shape[0]
    Cout = w2.shape[0]
    Ho = (H - 1) * stride + 1
    Wo = (W - 1) * stride + 1

    # ---- fused (1x1 convT -> clamp -> 1x1 conv) over the "hit" pixels only ----
    M = H * W
    Mpad = ((M + 127) // 128) * 128            # lane-dense tiles
    TM = min(tm_max, Mpad)
    Mpad = ((Mpad + TM - 1) // TM) * TM
    num_tiles = Mpad // TM

    x3 = x.reshape(N, Cin, M)                  # channels-first, no transpose
    if Mpad != M:
        # padded pixels produce the bias-only constant and are sliced off below
        x3 = jnp.pad(x3, ((0, 0), (0, 0), (0, Mpad - M)))

    kernel = functools.partial(_fused_kernel, min_v=min_value, max_v=max_value)
    out_hits = pl.pallas_call(
        kernel,
        out_shape=jax.ShapeDtypeStruct((N, Cout, Mpad), jnp.float32),
        grid=(N, num_tiles),
        in_specs=[
            pl.BlockSpec((None, Cin, TM), lambda n, t: (n, 0, t)),   # x tile
            pl.BlockSpec((Cmid, Cin), lambda n, t: (0, 0)),          # w1 (resident)
            pl.BlockSpec((Cmid, 1), lambda n, t: (0, 0)),            # b1
            pl.BlockSpec((Cout, Cmid), lambda n, t: (0, 0)),         # w2 (resident)
            pl.BlockSpec((Cout, 1), lambda n, t: (0, 0)),            # b2
        ],
        out_specs=pl.BlockSpec((None, Cout, TM), lambda n, t: (n, 0, t)),
        compiler_params=pltpu.CompilerParams(
            dimension_semantics=("parallel", "parallel")),
    )(x3, w1, b1[:, None], w2, b2[:, None])

    out_hits = out_hits[:, :, :M].reshape(N, Cout, H, W)

    # ---- non-hit positions of the stride-3 scatter ----
    # There the transposed-conv output is exactly b1, so the model output is a
    # per-channel constant: w2 @ clamp(b1) + b2.  Pure layout glue in JAX.
    v_const = jnp.minimum(jnp.maximum(b1, min_value), max_value)   # (Cmid,)
    const_out = w2 @ v_const + b2                                  # (Cout,)
    out = jnp.broadcast_to(const_out.reshape(1, Cout, 1, 1), (N, Cout, Ho, Wo))
    out = out.at[:, :, ::stride, ::stride].set(out_hits)
    return out


if __name__ == "__main__":
    # Small shapes consistent with the module structure:
    #   ConvTranspose2d(Cin -> Cmid, k=1, stride=3), Conv2d(Cmid -> Cout, k=1)
    N, Cin, Cmid, Cout, H, W = 2, 32, 16, 24, 6, 6
    stride = 3
    min_value, max_value = 0.592785640239, 0.0528118573668

    key = jax.random.PRNGKey(0)
    kx, kw1, kb1, kw2, kb2 = jax.random.split(key, 5)

    x = jax.random.normal(kx, (N, Cin, H, W), dtype=jnp.float32)
    # ConvTranspose2d weight (Cin, Cmid, 1, 1) -> stored pre-transposed (Cmid, Cin)
    w1 = 0.05 * jax.random.normal(kw1, (Cmid, Cin), dtype=jnp.float32)
    b1 = 0.05 * jax.random.normal(kb1, (Cmid,), dtype=jnp.float32)
    # Conv2d weight (Cout, Cmid, 1, 1) -> stored (Cout, Cmid)
    w2 = 0.05 * jax.random.normal(kw2, (Cout, Cmid), dtype=jnp.float32)
    b2 = 0.05 * jax.random.normal(kb2, (Cout,), dtype=jnp.float32)

    out = model_forward(x, w1, b1, w2, b2, min_value, max_value, stride)
    jax.block_until_ready(out)

    # Pure-JAX reference of the same math.
    Ho, Wo = (H - 1) * stride + 1, (W - 1) * stride + 1
    xcl = jnp.transpose(x, (0, 2, 3, 1))                             # NHWC
    z_ref = jnp.einsum("nhwc,dc->nhwd", xcl, w1) + b1                # convT (1x1)
    full_ref = jnp.broadcast_to(b1.reshape(1, 1, 1, Cmid), (N, Ho, Wo, Cmid))
    full_ref = full_ref.at[:, ::stride, ::stride, :].set(z_ref)
    v_ref = jnp.minimum(jnp.maximum(full_ref, min_value), max_value)
    out_ref = (jnp.einsum("nhwd,ed->nhwe", v_ref, w2) + b2).transpose(0, 3, 1, 2)

    assert out.shape == (N, Cout, Ho, Wo)
    assert jnp.allclose(out, out_ref, atol=1e-5, rtol=1e-5)

    print("KERNEL_OK")
</pallas_src>

<mosaic_0001>
module attributes {stable_mosaic.version = 11 : i64} {
  func.func @_fused_kernel(%arg0: i32, %arg1: i32, %arg2: memref<1x32x128xf32, #tpu.memory_space<vmem>>, %arg3: memref<16x32xf32, #tpu.memory_space<vmem>>, %arg4: memref<16x1xf32, #tpu.memory_space<vmem>>, %arg5: memref<24x16xf32, #tpu.memory_space<vmem>>, %arg6: memref<24x1xf32, #tpu.memory_space<vmem>>, %arg7: memref<1x24x128xf32, #tpu.memory_space<vmem>>) attributes {dimension_semantics = [#tpu.dimension_semantics<parallel>, #tpu.dimension_semantics<parallel>], iteration_bounds = array<i64: 2, 1>, scalar_prefetch = 0 : i64, scratch_operands = 0 : i64, tpu.core_type = #tpu.core_type<tc>, window_params = [{transform_indices = @transform_0, window_bounds = array<i64: 1, 32, 128>}, {pipeline_mode = #tpu.pipeline_mode<synchronous>, transform_indices = @transform_1, window_bounds = array<i64: 16, 32>}, {pipeline_mode = #tpu.pipeline_mode<synchronous>, transform_indices = @transform_2, window_bounds = array<i64: 16, 1>}, {pipeline_mode = #tpu.pipeline_mode<synchronous>, transform_indices = @transform_3, window_bounds = array<i64: 24, 16>}, {pipeline_mode = #tpu.pipeline_mode<synchronous>, transform_indices = @transform_4, window_bounds = array<i64: 24, 1>}, {transform_indices = @transform_5, window_bounds = array<i64: 1, 24, 128>}]} {
    %c0 = arith.constant 0 : index
    %c0_0 = arith.constant 0 : index
    %0 = vector.load %arg3[%c0, %c0_0] : memref<16x32xf32, #tpu.memory_space<vmem>>, vector<16x32xf32>
    %c0_1 = arith.constant 0 : index
    %c0_2 = arith.constant 0 : index
    %c0_3 = arith.constant 0 : index
    %1 = vector.load %arg2[%c0_1, %c0_2, %c0_3] : memref<1x32x128xf32, #tpu.memory_space<vmem>>, vector<1x32x128xf32>
    %2 = vector.shape_cast %1 : vector<1x32x128xf32> to vector<32x128xf32>
    %cst = arith.constant dense<0.000000e+00> : vector<16x128xf32>
    %3 = tpu.matmul %0, %2, %cst {dimension_numbers = #tpu.dot_dimension_numbers<[1], [0], [0], [1], [0, 0, 1, 1], [], []>} : vector<16x32xf32>, vector<32x128xf32>, vector<16x128xf32> -> vector<16x128xf32>
    %c0_4 = arith.constant 0 : index
    %c0_5 = arith.constant 0 : index
    %4 = vector.load %arg4[%c0_4, %c0_5] : memref<16x1xf32, #tpu.memory_space<vmem>>, vector<16x1xf32>
    %5 = vector.broadcast %4 : vector<16x1xf32> to vector<16x128xf32>
    %6 = arith.addf %3, %5 : vector<16x128xf32>
    %cst_6 = arith.constant 0.592785656 : f32
    %7 = vector.broadcast %cst_6 : f32 to vector<16x128xf32>
    %8 = arith.maximumf %6, %7 : vector<16x128xf32>
    %cst_7 = arith.constant 0.0528118573 : f32
    %9 = vector.broadcast %cst_7 : f32 to vector<16x128xf32>
    %10 = arith.minimumf %8, %9 : vector<16x128xf32>
    %c0_8 = arith.constant 0 : index
    %c0_9 = arith.constant 0 : index
    %11 = vector.load %arg5[%c0_8, %c0_9] : memref<24x16xf32, #tpu.memory_space<vmem>>, vector<24x16xf32>
    %cst_10 = arith.constant dense<0.000000e+00> : vector<24x128xf32>
    %12 = tpu.matmul %11, %10, %cst_10 {dimension_numbers = #tpu.dot_dimension_numbers<[1], [0], [0], [1], [0, 0, 1, 1], [], []>} : vector<24x16xf32>, vector<16x128xf32>, vector<24x128xf32> -> vector<24x128xf32>
    %c0_11 = arith.constant 0 : index
    %c0_12 = arith.constant 0 : index
    %13 = vector.load %arg6[%c0_11, %c0_12] : memref<24x1xf32, #tpu.memory_space<vmem>>, vector<24x1xf32>
    %14 = vector.broadcast %13 : vector<24x1xf32> to vector<24x128xf32>
    %15 = arith.addf %12, %14 : vector<24x128xf32>
    %c0_13 = arith.constant 0 : index
    %c0_14 = arith.constant 0 : index
    %c0_15 = arith.constant 0 : index
    %16 = vector.load %arg7[%c0_13, %c0_14, %c0_15] : memref<1x24x128xf32, #tpu.memory_space<vmem>>, vector<1x24x128xf32>
    %17 = vector.shape_cast %16 : vector<1x24x128xf32> to vector<24x128xf32>
    %18 = vector.shape_cast %15 : vector<24x128xf32> to vector<1x24x128xf32>
    tpu.vector_store %arg7[%c0_13, %c0_14, %c0_15], %18 {strides = array<i32>} : memref<1x24x128xf32, #tpu.memory_space<vmem>>, vector<1x24x128xf32>,
    return
  }
  func.func @transform_0(%arg0: i32, %arg1: i32) -> (i32, i32, i32) {
    %c0_i32 = arith.constant 0 : i32
    %c0_i32_0 = arith.constant 0 : i32
    return %arg0, %c0_i32, %arg1 : i32, i32, i32
  }
  func.func @transform_1(%arg0: i32, %arg1: i32) -> (i32, i32) {
    %c0_i32 = arith.constant 0 : i32
    %c0_i32_0 = arith.constant 0 : i32
    %c0_i32_1 = arith.constant 0 : i32
    return %c0_i32, %c0_i32_0 : i32, i32
  }
  func.func @transform_2(%arg0: i32, %arg1: i32) -> (i32, i32) {
    %c0_i32 = arith.constant 0 : i32
    %c0_i32_0 = arith.constant 0 : i32
    %c0_i32_1 = arith.constant 0 : i32
    return %c0_i32, %c0_i32_0 : i32, i32
  }
  func.func @transform_3(%arg0: i32, %arg1: i32) -> (i32, i32) {
    %c0_i32 = arith.constant 0 : i32
    %c0_i32_0 = arith.constant 0 : i32
    %c0_i32_1 = arith.constant 0 : i32
    return %c0_i32, %c0_i32_0 : i32, i32
  }
  func.func @transform_4(%arg0: i32, %arg1: i32) -> (i32, i32) {
    %c0_i32 = arith.constant 0 : i32
    %c0_i32_0 = arith.constant 0 : i32
    %c0_i32_1 = arith.constant 0 : i32
    return %c0_i32, %c0_i32_0 : i32, i32
  }
  func.func @transform_5(%arg0: i32, %arg1: i32) -> (i32, i32, i32) {
    %c0_i32 = arith.constant 0 : i32
    %c0_i32_0 = arith.constant 0 : i32
    return %arg0, %c0_i32, %arg1 : i32, i32, i32
  }
}

</mosaic_0001>

<llo_original>
// kernel: tpu_custom_call.1
$region0: #{tpu_custom_call.1}
  #allocation0 [shape = 'u32[]', space=smem, size = 0x4, offset = 0x4, fixed_abs, tag = 'smem constant byte address 0x4 - core index']
  #allocation1 [shape = 'u32[144,128]{1,0:T(1,128)}', space=vmem, size = 0x12000, scoped, tag = 'internal scratch']
  %s0 = inlined_call_operand.vmem [shape: f32[2,32,128], index: 0, kind: input, shape index: {}]
  %s1 = inlined_call_operand.hbm [shape: f32[16,32], index: 1, kind: input, shape index: {}]
  %s2 = inlined_call_operand.vmem [shape: f32[16,1], index: 2, kind: input, shape index: {}]
  %s3 = inlined_call_operand.vmem [shape: f32[24,16], index: 3, kind: input, shape index: {}]
  %s4 = inlined_call_operand.vmem [shape: f32[24,1], index: 4, kind: input, shape index: {}]
  %s5 = inlined_call_operand.hbm [shape: f32[2,24,128], index: 5, kind: output, shape index: {}]
  %s6 = sld [smem:[#allocation0]]
  $region57: #{tpu_custom_call.1} parent=0
    _
  %s8 = ssub.s32 1, %s6
  %s9 = scalar_select 0, %s8, %s6
  $region1: #{tpu_custom_call.1} parent=0
    #allocation2 [shape = 'u8[8192]{0}', space=vmem, size = 0x2000, scoped, tag = 'input window, operand 1, single buffered']
    #allocation3 [shape = 's32[2]{0}', space=sflag, size = 0x8, scoped, tag = 'scoped memory for tpu_custom_call.1']
    #allocation4 [shape = 's32[2]{0}', space=sflag, size = 0x8, scoped, tag = 'scoped memory for tpu_custom_call.1']
    #allocation5 [shape = 'u8[24576]{0}', space=vmem, size = 0x6000, scoped, tag = 'output window, operand 0']
    %10 = vsyncpa [#allocation3], 0
    %11 = vsyncpa [#allocation4], 0
    %s12 = scalar_lea.sflag [#allocation4], 1
    %13 = vsyncpa %s12, 0
    loop: start=0, step=1, limit=4
    $region2: #{tpu_custom_call.1} parent=1 // loop_pre_header
      _
    $region3: #{tpu_custom_call.1} parent=1 // loop_header
      %s15 = sphi 0, %s19
      %p16 = scmp.ge.s32.totalorder %s15, 4
      %s22 = sphi 0, %s34
      %s23 = sphi 0, %s30
      %s24 = sphi 0, %s22
      %s25 = sphi 0, %s23
      %s26 = sphi 0, %s24
      %s27 = sphi 0, %s25
      %s39 = sphi 0, %s41
      %s42 = sphi 0, %s39
      %s43 = sphi 0, %s42
      %s59 = sphi 0, %s43
      %s63 = sphi 0, %s63
      %s65 = sphi 0, %s63
      %s66 = sphi 0, %s65
      %s80 = sphi 0, %s66
      %s84 = sphi 0, %s84
      %s86 = sphi 0, %s84
      %s87 = sphi 0, %s86
      %s101 = sphi 0, %s87
      %s105 = sphi 0, %s105
      %s107 = sphi 0, %s105
      %s108 = sphi 0, %s107
      %s122 = sphi 0, %s108
      %s126 = sphi 0, %s126
      %s128 = sphi 0, %s126
      %s129 = sphi 0, %s128
      %s143 = sphi 0, %s129
      %s151 = sphi 0, %s153
      %s154 = sphi 0, %s151
      %s155 = sphi 0, %s154
      %s171 = sphi 0, %s155
    $region4: #{tpu_custom_call.1} parent=1 // loop_header_branch
      %18 = sbr.rel (%p16) target = $region8
    $region5: #{tpu_custom_call.1} parent=1 // loop_body
      %s20 = ssub.s32 %s15, 1
      %s21 = ssub.s32 %s15, 2
      %s28 = sadd.s32 1, %s23
      %p29 = scmp.ge.s32.totalorder %s28, 1
      %s30 = scalar_select %p29, 0, %s28
      %s31 = sadd.s32 1, %s22
      %s32 = scalar_select %p29, %s31, %s22
      %p33 = scmp.ge.s32.totalorder %s32, 2
      %s34 = scalar_select %p33, 0, %s32
      %s35 = ssub.s32 %s22, %s34
      %s36 = ssub.s32 %s23, %s30
      %s37 = sor.u32 %s35, %s36
      %p38 = scmp.eq.s32.totalorder %s37, 0
      %s40 = sadd.s32 %s39, 1
      %s41 = scalar_select %p38, %s39, %s40
      %p44 = pneg %p38
      %p45 = scmp.eq.s32.totalorder %s15, 1
      %p46 = por %p44, %p45
      %p47 = scmp.ne.s32.totalorder %s39, %s42
      %p48 = scmp.eq.s32.totalorder %s15, 0
      %p49 = por %p47, %p48
      %p50 = scmp.ne.s32.totalorder %s39, %s42
      %p51 = scmp.eq.s32.totalorder %s20, 1
      %p52 = por %p50, %p51
      %p53 = scmp.ne.s32.totalorder %s42, %s43
      %p54 = scmp.eq.s32.totalorder %s20, 0
      %p55 = por %p53, %p54
      %p56 = scmp.ne.s32.totalorder %s42, %s43
      %p57 = scmp.eq.s32.totalorder %s21, 1
      %p58 = por %p56, %p57
      %p60 = scmp.ne.s32.totalorder %s43, %s59
      %p61 = scmp.eq.s32.totalorder %s21, 0
      %p62 = por %p60, %p61
      %s64 = sadd.s32 %s63, 1
      %p67 = scmp.eq.s32.totalorder %s15, 1
      %p68 = scmp.ne.s32.totalorder %s63, %s65
      %p69 = scmp.eq.s32.totalorder %s15, 0
      %p70 = por %p68, %p69
      %p71 = scmp.ne.s32.totalorder %s63, %s65
      %p72 = scmp.eq.s32.totalorder %s20, 1
      %p73 = por %p71, %p72
      %p74 = scmp.ne.s32.totalorder %s65, %s66
      %p75 = scmp.eq.s32.totalorder %s20, 0
      %p76 = por %p74, %p75
      %p77 = scmp.ne.s32.totalorder %s65, %s66
      %p78 = scmp.eq.s32.totalorder %s21, 1
      %p79 = por %p77, %p78
      %p81 = scmp.ne.s32.totalorder %s66, %s80
      %p82 = scmp.eq.s32.totalorder %s21, 0
      %p83 = por %p81, %p82
      %s85 = sadd.s32 %s84, 1
      %p88 = scmp.eq.s32.totalorder %s15, 1
      %p89 = scmp.ne.s32.totalorder %s84, %s86
      %p90 = scmp.eq.s32.totalorder %s15, 0
      %p91 = por %p89, %p90
      %p92 = scmp.ne.s32.totalorder %s84, %s86
      %p93 = scmp.eq.s32.totalorder %s20, 1
      %p94 = por %p92, %p93
      %p95 = scmp.ne.s32.totalorder %s86, %s87
      %p96 = scmp.eq.s32.totalorder %s20, 0
      %p97 = por %p95, %p96
      %p98 = scmp.ne.s32.totalorder %s86, %s87
      %p99 = scmp.eq.s32.totalorder %s21, 1
      %p100 = por %p98, %p99
      %p102 = scmp.ne.s32.totalorder %s87, %s101
      %p103 = scmp.eq.s32.totalorder %s21, 0
      %p104 = por %p102, %p103
      %s106 = sadd.s32 %s105, 1
      %p109 = scmp.eq.s32.totalorder %s15, 1
      %p110 = scmp.ne.s32.totalorder %s105, %s107
      %p111 = scmp.eq.s32.totalorder %s15, 0
      %p112 = por %p110, %p111
      %p113 = scmp.ne.s32.totalorder %s105, %s107
      %p114 = scmp.eq.s32.totalorder %s20, 1
      %p115 = por %p113, %p114
      %p116 = scmp.ne.s32.totalorder %s107, %s108
      %p117 = scmp.eq.s32.totalorder %s20, 0
      %p118 = por %p116, %p117
      %p119 = scmp.ne.s32.totalorder %s107, %s108
      %p120 = scmp.eq.s32.totalorder %s21, 1
      %p121 = por %p119, %p120
      %p123 = scmp.ne.s32.totalorder %s108, %s122
      %p124 = scmp.eq.s32.totalorder %s21, 0
      %p125 = por %p123, %p124
      %s127 = sadd.s32 %s126, 1
      %p130 = scmp.eq.s32.totalorder %s15, 1
      %p131 = scmp.ne.s32.totalorder %s126, %s128
      %p132 = scmp.eq.s32.totalorder %s15, 0
      %p133 = por %p131, %p132
      %p134 = scmp.ne.s32.totalorder %s126, %s128
      %p135 = scmp.eq.s32.totalorder %s20, 1
      %p136 = por %p134, %p135
      %p137 = scmp.ne.s32.totalorder %s128, %s129
      %p138 = scmp.eq.s32.totalorder %s20, 0
      %p139 = por %p137, %p138
      %p140 = scmp.ne.s32.totalorder %s128, %s129
      %p141 = scmp.eq.s32.totalorder %s21, 1
      %p142 = por %p140, %p141
      %p144 = scmp.ne.s32.totalorder %s129, %s143
      %p145 = scmp.eq.s32.totalorder %s21, 0
      %p146 = por %p144, %p145
      %s147 = ssub.s32 %s22, %s34
      %s148 = ssub.s32 %s23, %s30
      %s149 = sor.u32 %s147, %s148
      %p150 = scmp.eq.s32.totalorder %s149, 0
      %s152 = sadd.s32 %s151, 1
      %s153 = scalar_select %p150, %s151, %s152
      %p156 = pneg %p150
      %p157 = scmp.eq.s32.totalorder %s15, 1
      %p158 = por %p156, %p157
      %p159 = scmp.ne.s32.totalorder %s151, %s154
      %p160 = scmp.eq.s32.totalorder %s15, 0
      %p161 = por %p159, %p160
      %p162 = scmp.ne.s32.totalorder %s151, %s154
      %p163 = scmp.eq.s32.totalorder %s20, 1
      %p164 = por %p162, %p163
      %p165 = scmp.ne.s32.totalorder %s154, %s155
      %p166 = scmp.eq.s32.totalorder %s20, 0
      %p167 = por %p165, %p166
      %p168 = scmp.ne.s32.totalorder %s154, %s155
      %p169 = scmp.eq.s32.totalorder %s21, 1
      %p170 = por %p168, %p169
      %p172 = scmp.ne.s32.totalorder %s155, %s171
      %p173 = scmp.eq.s32.totalorder %s21, 0
      %p174 = por %p172, %p173
      %p175 = scmp.le.s32.totalorder 1, %s15
      %p176 = scmp.lt.s32.totalorder %s15, 3
      %p177 = pnand %p175, %p176
      %p178 = pneg %p177
      // Predicated region
      $region9: #{tpu_custom_call.1} parent=5 // pred_check
        _
      $region10: #{tpu_custom_call.1} parent=5 // pred_check_branch
        %180 = sbr.rel (%p177) target = $region12
      $region11: #{tpu_custom_call.1} parent=5 // pred_region
        %s181 = ssub.s32 %s15, 1
        // Predicated region
        $region13: #{tpu_custom_call.1} parent=11 // pred_check
          %p182 = pneg %p76
        $region14: #{tpu_custom_call.1} parent=11 // pred_check_branch
          %184 = sbr.rel (%p182) target = $region16
        $region15: #{tpu_custom_call.1} parent=11 // pred_region
          %s186 = ssub.s32 256, 256
          %187 = vsyncadd [#allocation3], %s186
          %s188 = sshll.u32 [#allocation2], 4
          %s189 = int_to_ptr.vmem [resolvable:$true] %s188
          %194 = dma.hbm_to_vmem [thread:$0]  %s1, 256, %s189, [#allocation3], 128, 128, 8
        $region16: #{tpu_custom_call.1} parent=11 // pred_fallthru
          _
        // Predicated region
        $region17: #{tpu_custom_call.1} parent=11 // pred_check
          %p195 = pneg %p97
        $region18: #{tpu_custom_call.1} parent=11 // pred_check_branch
          %197 = sbr.rel (%p195) target = $region20
        $region19: #{tpu_custom_call.1} parent=11 // pred_region
          _
        $region20: #{tpu_custom_call.1} parent=11 // pred_fallthru
          _
        // Predicated region
        $region21: #{tpu_custom_call.1} parent=11 // pred_check
          %p198 = pneg %p118
        $region22: #{tpu_custom_call.1} parent=11 // pred_check_branch
          %200 = sbr.rel (%p198) target = $region24
        $region23: #{tpu_custom_call.1} parent=11 // pred_region
          _
        $region24: #{tpu_custom_call.1} parent=11 // pred_fallthru
          _
        // Predicated region
        $region25: #{tpu_custom_call.1} parent=11 // pred_check
          %p201 = pneg %p139
        $region26: #{tpu_custom_call.1} parent=11 // pred_check_branch
          %203 = sbr.rel (%p201) target = $region28
        $region27: #{tpu_custom_call.1} parent=11 // pred_region
          _
        $region28: #{tpu_custom_call.1} parent=11 // pred_fallthru
          _
      $region12: #{tpu_custom_call.1} parent=5 // pred_fallthru
        _
      %p204 = scmp.lt.s32.totalorder %s15, 2
      // Predicated region
      $region29: #{tpu_custom_call.1} parent=5 // pred_check
        %p205 = pneg %p204
      $region30: #{tpu_custom_call.1} parent=5 // pred_check_branch
        %207 = sbr.rel (%p205) target = $region32
      $region31: #{tpu_custom_call.1} parent=5 // pred_region
        // Predicated region
        $region33: #{tpu_custom_call.1} parent=31 // pred_check
          %p208 = pneg %p49
        $region34: #{tpu_custom_call.1} parent=31 // pred_check_branch
          %210 = sbr.rel (%p208) target = $region36
        $region35: #{tpu_custom_call.1} parent=31 // pred_region
          %p211 = scmp.lt.s32.totalorder %s22, 1
          %s212 = scalar_select %p211, %s22, 1
          %p213 = scmp.lt.s32.totalorder %s23, 0
          %s214 = scalar_select %p213, %s23, 0
          %s215 = smul.addr %s212, 4
          %s216 = sadd.s32 %s214, %s215
          %s217 = smul.addr %s216, 8
          %s218 = scalar_lea.vmem %s0, %s217
        $region36: #{tpu_custom_call.1} parent=31 // pred_fallthru
          _
      $region32: #{tpu_custom_call.1} parent=5 // pred_fallthru
        _
      %p219 = scmp.le.s32.totalorder 1, %s15
      %p220 = scmp.lt.s32.totalorder %s15, 3
      %p221 = pnand %p219, %p220
      %p222 = pneg %p221
      // Predicated region
      $region37: #{tpu_custom_call.1} parent=5 // pred_check
        _
      $region38: #{tpu_custom_call.1} parent=5 // pred_check_branch
        %224 = sbr.rel (%p221) target = $region40
      $region39: #{tpu_custom_call.1} parent=5 // pred_region
        %s225 = ssub.s32 %s15, 1
        // Predicated region
        $region41: #{tpu_custom_call.1} parent=39 // pred_check
          %p226 = pneg %p76
        $region42: #{tpu_custom_call.1} parent=39 // pred_check_branch
          %228 = sbr.rel (%p226) target = $region44
        $region43: #{tpu_custom_call.1} parent=39 // pred_region
          %229 = dma.done [#allocation3], 256
        $region44: #{tpu_custom_call.1} parent=39 // pred_fallthru
          _
        %p230 = scmp.lt.s32.totalorder %s24, 1
        %s231 = scalar_select %p230, %s24, 1
        %p232 = scmp.lt.s32.totalorder %s25, 0
        %s233 = scalar_select %p232, %s25, 0
        %s234 = smul.addr %s231, 4
        %s235 = sadd.s32 %s233, %s234
        %s236 = smul.addr %s235, 8
        %s237 = scalar_lea.vmem %s0, %s236
        %p238 = pneg %p55
        %p239 = pneg %p52
        %p240 = pneg %p76
        %p241 = pneg %p73
        %p242 = pneg %p97
        %p243 = pneg %p94
        %p244 = pneg %p118
        %p245 = pneg %p115
        %p246 = pneg %p139
        %p247 = pneg %p136
        %p248 = pneg %p167
        %p249 = pneg %p164
        %s250 = sand.u32 %s154, 1
        %s251 = scalar_lea.sflag [#allocation4], %s250
        %s252 = sand.u32 %s154, 1
        %s253 = smul.addr %s252, 24
        %s254 = scalar_lea.vmem [#allocation5], %s253
        %p255 = scmp.lt.s32.totalorder %s24, 1
        %s256 = scalar_select %p255, %s24, 1
        %p257 = scmp.lt.s32.totalorder %s25, 0
        %s258 = scalar_select %p257, %s25, 0
        %s259 = smul.addr %s256, 4
        %s260 = sadd.s32 %s258, %s259
        %s261 = smul.addr %s260, 8
        %s262 = scalar_lea.vmem %s0, %s261
        %v263 = vld [vmem:[#allocation2] sm:$0xff]
        %v264 = vld [vmem:[#allocation2 + $0x8] sm:$0xff]
        %v265 = vld [vmem:[%s262] sm:$0xff]
        %v266 = vld [vmem:[%s262 + $0x8] sm:$0xff]
        %v267 = vld [vmem:[%s262 + $0x10] sm:$0xff]
        %v268 = vld [vmem:[%s262 + $0x18] sm:$0xff]
        %v269 = vld [vmem:[%s2] sm:$0xff]
        %v270 = vld [vmem:[%s2 + $0x8] sm:$0xff]
        %272 = vset.pattern.permute.xlu0 0
        %273 = vperm.xlu0 %272, %v269
        %v274 = vpop.permute.xlu0 %273
        %277 = vset.pattern.permute.xlu0 0
        %278 = vperm.xlu0 %277, %v270
        %v279 = vpop.permute.xlu0 %278
        %vm281 = vcmask 261120
        %v283 = vsel %vm281, %v263, 0
        %v286 = vsel %vm281, %v264, 0
        %288 = vmatprep.subr.mxu0 0.0
        %289 = vmatpush1.msra.mxu0 0.0
        %290 = vmatprep.subr.mxu0 0.0
        %291 = vmatpush1.msra.mxu0 0.0
        %292 = vmatprep.subr.mxu0 0.0
        %293 = vmatpush1.msra.mxu0 0.0
        %294 = vmatprep.subr.mxu0 0.0
        %295 = vmatpush1.msra.mxu0 0.0
        %296 = vmatprep.subr.mxu0 0.0
        %297 = vmatpush1.msra.mxu0 0.0
        %298 = vmatprep.subr.mxu0 0.0
        %299 = vmatpush1.msra.mxu0 0.0
        %300 = vmatprep.subr.mxu0 0.0
        %301 = vmatpush1.msra.mxu0 0.0
        %302 = vmatprep.subr.mxu0 0.0
        %303 = vmatpush1.msra.mxu0 0.0
        %304 = vmatprep.subr.mxu0 0.0
        %305 = vmatpush1.msra.mxu0 0.0
        %306 = vmatprep.subr.mxu0 0.0
        %307 = vmatpush1.msra.mxu0 0.0
        %308 = vmatprep.subr.mxu0 0.0
        %309 = vmatpush1.msra.mxu0 0.0
        %310 = vmatprep.subr.mxu0 0.0
        %311 = vmatpush1.msra.mxu0 0.0
        %312 = vmatprep.subr.mxu0 0.0
        %313 = vmatpush1.msra.mxu0 %v268
        %314 = vmatprep.subr.mxu0 0.0
        %315 = vmatpush1.msra.mxu0 %v267
        %316 = vmatprep.subr.mxu0 0.0
        %317 = vmatpush1.msra.mxu0 %v266
        %318 = vmatprep.subr.mxu0 0.0
        %319 = vmatpush1.msra.mxu0 %v265
        %320 = vmatprep.subr.mxu0 0.0
        %321 = vmatpush2.msra.mxu0 0.0
        %322 = vmatprep.subr.mxu0 0.0
        %323 = vmatpush2.msra.mxu0 0.0
        %324 = vmatprep.subr.mxu0 0.0
        %325 = vmatpush2.msra.mxu0 0.0
        %326 = vmatprep.subr.mxu0 0.0
        %327 = vmatpush2.msra.mxu0 0.0
        %328 = vmatprep.subr.mxu0 0.0
        %329 = vmatpush2.msra.mxu0 0.0
        %330 = vmatprep.subr.mxu0 0.0
        %331 = vmatpush2.msra.mxu0 0.0
        %332 = vmatprep.subr.mxu0 0.0
        %333 = vmatpush2.msra.mxu0 0.0
        %334 = vmatprep.subr.mxu0 0.0
        %335 = vmatpush2.msra.mxu0 0.0
        %336 = vmatprep.subr.mxu0 0.0
        %337 = vmatpush2.msra.mxu0 0.0
        %338 = vmatprep.subr.mxu0 0.0
        %339 = vmatpush2.msra.mxu0 0.0
        %340 = vmatprep.subr.mxu0 0.0
        %341 = vmatpush2.msra.mxu0 0.0
        %342 = vmatprep.subr.mxu0 0.0
        %343 = vmatpush2.msra.mxu0 0.0
        %344 = vmatprep.subr.mxu0 0.0
        %345 = vmatpush2.msra.mxu0 0.0
        %346 = vmatprep.subr.mxu0 0.0
        %347 = vmatpush2.msra.mxu0 0.0
        %348 = vmatprep.subr.mxu0 0.0
        %349 = vmatpush2.msra.mxu0 0.0
        %350 = vmatprep.subr.mxu0 0.0
        %351 = vmatpush2.msra.mxu0 0.0
        %352 = vmatprep.mubr.f32.mxu0 0.0
        %353 = vmatmul.mubr.f32.gmra.mxu0 %v283
        %v354 = vpop.f32.mrf.mxu0
        %v355 = vadd.f32 %v274, %v354
        %v356 = vpop.f32.mrf.mxu0
        %357 = vmatprep.mubr.f32.mxu0 0.0
        %358 = vmatmul.mubr.f32.gmra.mxu0 %v286
        %v359 = vpop.f32.mrf.mxu0
        %v360 = vadd.f32 %v279, %v359
        %v361 = vpop.f32.mrf.mxu0
        %362 = vdwg.mxu0
        %v363 = vmax.f32 %v355, 0.59278566
        %v364 = vmax.f32 %v360, 0.59278566
        %v365 = vmin.f32 %v363, 0.052811857
        %v366 = vmin.f32 %v364, 0.052811857
        %v367 = vld [vmem:[%s3] sm:$0xff]
        %v368 = vld [vmem:[%s3 + $0x8] sm:$0xff]
        %v369 = vld [vmem:[%s3 + $0x10] sm:$0xff]
        %v370 = vld [vmem:[%s4] sm:$0xff]
        %v371 = vld [vmem:[%s4 + $0x8] sm:$0xff]
        %v372 = vld [vmem:[%s4 + $0x10] sm:$0xff]
        %374 = vset.pattern.permute.xlu0 0
        %375 = vperm.xlu0 %374, %v370
        %v376 = vpop.permute.xlu0 %375
        %379 = vset.pattern.permute.xlu0 0
        %380 = vperm.xlu0 %379, %v371
        %v381 = vpop.permute.xlu0 %380
        %384 = vset.pattern.permute.xlu0 0
        %385 = vperm.xlu0 %384, %v372
        %v386 = vpop.permute.xlu0 %385
        %vm388 = vcmask 130048
        %v390 = vsel %vm388, %v367, 0
        %v393 = vsel %vm388, %v368, 0
        %v396 = vsel %vm388, %v369, 0
        %398 = vmatprep.subr.mxu0 0.0
        %399 = vmatpush1.msra.mxu0 0.0
        %400 = vmatprep.subr.mxu0 0.0
        %401 = vmatpush1.msra.mxu0 0.0
        %402 = vmatprep.subr.mxu0 0.0
        %403 = vmatpush1.msra.mxu0 0.0
        %404 = vmatprep.subr.mxu0 0.0
        %405 = vmatpush1.msra.mxu0 0.0
        %406 = vmatprep.subr.mxu0 0.0
        %407 = vmatpush1.msra.mxu0 0.0
        %408 = vmatprep.subr.mxu0 0.0
        %409 = vmatpush1.msra.mxu0 0.0
        %410 = vmatprep.subr.mxu0 0.0
        %411 = vmatpush1.msra.mxu0 0.0
        %412 = vmatprep.subr.mxu0 0.0
        %413 = vmatpush1.msra.mxu0 0.0
        %414 = vmatprep.subr.mxu0 0.0
        %415 = vmatpush1.msra.mxu0 0.0
        %416 = vmatprep.subr.mxu0 0.0
        %417 = vmatpush1.msra.mxu0 0.0
        %418 = vmatprep.subr.mxu0 0.0
        %419 = vmatpush1.msra.mxu0 0.0
        %420 = vmatprep.subr.mxu0 0.0
        %421 = vmatpush1.msra.mxu0 0.0
        %422 = vmatprep.subr.mxu0 0.0
        %423 = vmatpush1.msra.mxu0 0.0
        %424 = vmatprep.subr.mxu0 0.0
        %425 = vmatpush1.msra.mxu0 0.0
        %426 = vmatprep.subr.mxu0 0.0
        %427 = vmatpush1.msra.mxu0 %v366
        %428 = vmatprep.subr.mxu0 0.0
        %429 = vmatpush1.msra.mxu0 %v365
        %430 = vmatprep.subr.mxu0 0.0
        %431 = vmatpush2.msra.mxu0 0.0
        %432 = vmatprep.subr.mxu0 0.0
        %433 = vmatpush2.msra.mxu0 0.0
        %434 = vmatprep.subr.mxu0 0.0
        %435 = vmatpush2.msra.mxu0 0.0
        %436 = vmatprep.subr.mxu0 0.0
        %437 = vmatpush2.msra.mxu0 0.0
        %438 = vmatprep.subr.mxu0 0.0
        %439 = vmatpush2.msra.mxu0 0.0
        %440 = vmatprep.subr.mxu0 0.0
        %441 = vmatpush2.msra.mxu0 0.0
        %442 = vmatprep.subr.mxu0 0.0
        %443 = vmatpush2.msra.mxu0 0.0
        %444 = vmatprep.subr.mxu0 0.0
        %445 = vmatpush2.msra.mxu0 0.0
        %446 = vmatprep.subr.mxu0 0.0
        %447 = vmatpush2.msra.mxu0 0.0
        %448 = vmatprep.subr.mxu0 0.0
        %449 = vmatpush2.msra.mxu0 0.0
        %450 = vmatprep.subr.mxu0 0.0
        %451 = vmatpush2.msra.mxu0 0.0
        %452 = vmatprep.subr.mxu0 0.0
        %453 = vmatpush2.msra.mxu0 0.0
        %454 = vmatprep.subr.mxu0 0.0
        %455 = vmatpush2.msra.mxu0 0.0
        %456 = vmatprep.subr.mxu0 0.0
        %457 = vmatpush2.msra.mxu0 0.0
        %458 = vmatprep.subr.mxu0 0.0
        %459 = vmatpush2.msra.mxu0 0.0
        %460 = vmatprep.subr.mxu0 0.0
        %461 = vmatpush2.msra.mxu0 0.0
        %462 = vmatprep.mubr.f32.mxu0 0.0
        %463 = vmatmul.mubr.f32.gmra.mxu0 %v390
        %v464 = vpop.f32.mrf.mxu0
        %v465 = vadd.f32 %v376, %v464
        %v466 = vpop.f32.mrf.mxu0
        %467 = vmatprep.mubr.f32.mxu0 0.0
        %468 = vmatmul.mubr.f32.gmra.mxu0 %v393
        %v469 = vpop.f32.mrf.mxu0
        %v470 = vadd.f32 %v381, %v469
        %v471 = vpop.f32.mrf.mxu0
        %472 = vmatprep.mubr.f32.mxu0 0.0
        %473 = vmatmul.mubr.f32.gmra.mxu0 %v396
        %v474 = vpop.f32.mrf.mxu0
        %v475 = vadd.f32 %v386, %v474
        %v476 = vpop.f32.mrf.mxu0
        %477 = vdwg.mxu0
        %478 = vst [vmem:[%s254] sm:$0xff] %v465
        %479 = vst [vmem:[%s254 + $0x8] sm:$0xff] %v470
        %480 = vst [vmem:[%s254 + $0x10] sm:$0xff] %v475
        %s481 = sand.u32 %s154, 1
        %s482 = scalar_lea.sflag [#allocation4], %s481
        %s483 = sand.u32 %s154, 1
        %s484 = smul.addr %s483, 24
        %s485 = scalar_lea.vmem [#allocation5], %s484
        // Predicated region
        $region45: #{tpu_custom_call.1} parent=39 // pred_check
          %p486 = pneg %p164
        $region46: #{tpu_custom_call.1} parent=39 // pred_check_branch
          %488 = sbr.rel (%p486) target = $region48
        $region47: #{tpu_custom_call.1} parent=39 // pred_region
          %s490 = ssub.s32 384, 384
          %491 = vsyncadd %s482, %s490
          %s492 = smul.addr %s24, 3
          %s493 = sadd.s32 %s25, %s492
          %s494 = smul.addr %s493, 128
          %s495 = scalar_lea.hbm %s5, %s494
          %s496 = sshll.u32 %s485, 4
          %s497 = int_to_ptr.vmem [resolvable:$true] %s496
          %502 = dma.vmem_to_hbm [thread:$0]  %s497, 384, %s495, %s482, 128, 128, 8
        $region48: #{tpu_custom_call.1} parent=39 // pred_fallthru
          _
      $region40: #{tpu_custom_call.1} parent=5 // pred_fallthru
        _
      %p503 = scmp.le.s32.totalorder 2, %s15
      // Predicated region
      $region49: #{tpu_custom_call.1} parent=5 // pred_check
        %p504 = pneg %p503
      $region50: #{tpu_custom_call.1} parent=5 // pred_check_branch
        %506 = sbr.rel (%p504) target = $region52
      $region51: #{tpu_custom_call.1} parent=5 // pred_region
        %s507 = ssub.s32 %s15, 2
        // Predicated region
        $region53: #{tpu_custom_call.1} parent=51 // pred_check
          %p508 = pneg %p170
        $region54: #{tpu_custom_call.1} parent=51 // pred_check_branch
          %510 = sbr.rel (%p508) target = $region56
        $region55: #{tpu_custom_call.1} parent=51 // pred_region
          %s511 = sand.u32 %s155, 1
          %s512 = scalar_lea.sflag [#allocation4], %s511
          %s513 = sand.u32 %s155, 1
          %s514 = smul.addr %s513, 24
          %s515 = scalar_lea.vmem [#allocation5], %s514
          %516 = dma.done %s512, 384
        $region56: #{tpu_custom_call.1} parent=51 // pred_fallthru
          _
      $region52: #{tpu_custom_call.1} parent=5 // pred_fallthru
        _
    $region6: #{tpu_custom_call.1} parent=1 // loop_footer
      %s19 = sadd.s32 1, %s15
    $region7: #{tpu_custom_call.1} parent=1 // loop_footer_branch
      %14 = sbr.rel target = $region3
    $region8: #{tpu_custom_call.1} parent=1 // loop_exit
      _
    %517 = vsyncpa [#allocation3], 1
    %s518 = scalar_lea.sflag [#allocation3], 1
    %519 = vsyncpa %s518, 1
    %520 = vsyncpa [#allocation4], 1
    %s521 = scalar_lea.sflag [#allocation4], 1
    %522 = vsyncpa %s521, 1

</llo_original>
